<compile_context>
chip_gen: v6e
topology: v6e:2x2x1
jax: 0.10.0
libtpu: 0.0.40
codegen_flags: <defaults>
</compile_context>

<pallas_src>
import math
import jax
import jax.numpy as jnp
from jax.experimental import pallas as pl
from jax.experimental.pallas import tpu as pltpu


def _round_up(v, m):
    return ((v + m - 1) // m) * m


def _pick_tile(dim, unit, cap):
    """Pick a tile (multiple of `unit`, <= cap) minimizing the padding of
    `dim` up to a multiple of the tile; ties keep the largest tile.
    Returns (tile, padded_dim)."""
    dim = _round_up(max(dim, 1), unit)
    cap = max(unit, (min(cap, dim) // unit) * unit)
    if dim <= cap:
        return dim, dim
    best_pad, best_t = None, unit
    for t in range(cap, unit - 1, -unit):
        pad = _round_up(dim, t) - dim
        if best_pad is None or pad < best_pad:
            best_pad, best_t = pad, t
        if pad == 0:
            break
    return best_t, dim + best_pad


def _make_kernel(has_bias, multi_k, compute_dtype):
    def dot(x, w):
        if compute_dtype is not None:
            x = x.astype(compute_dtype)
            w = w.astype(compute_dtype)
        return jnp.dot(x, w, preferred_element_type=jnp.float32)

    if not multi_k:
        if has_bias:
            def kernel(x_ref, w_ref, b_ref, o_ref):
                acc = dot(x_ref[0], w_ref[0])
                o_ref[0] = (acc + b_ref[0].astype(jnp.float32)).astype(o_ref.dtype)
        else:
            def kernel(x_ref, w_ref, o_ref):
                o_ref[0] = dot(x_ref[0], w_ref[0]).astype(o_ref.dtype)
        return kernel

    if has_bias:
        def kernel(x_ref, w_ref, b_ref, o_ref, acc_ref):
            k = pl.program_id(3)

            @pl.when(k == 0)
            def _init():
                acc_ref[...] = jnp.broadcast_to(
                    b_ref[0].astype(jnp.float32), acc_ref.shape)

            acc_ref[...] += dot(x_ref[0], w_ref[0])

            @pl.when(k == pl.num_programs(3) - 1)
            def _store():
                o_ref[0] = acc_ref[...].astype(o_ref.dtype)
    else:
        def kernel(x_ref, w_ref, o_ref, acc_ref):
            k = pl.program_id(3)

            @pl.when(k == 0)
            def _init():
                acc_ref[...] = jnp.zeros_like(acc_ref)

            acc_ref[...] += dot(x_ref[0], w_ref[0])

            @pl.when(k == pl.num_programs(3) - 1)
            def _store():
                o_ref[0] = acc_ref[...].astype(o_ref.dtype)
    return kernel


def ensemble_fc(x, weight, bias=None, *, tile_m=None, tile_n=None, tile_k=None,
                compute_dtype=None, vmem_block_budget=20 * 2**20,
                vmem_limit_bytes=32 * 2**20):
    """x: (E, B, In), weight: (E, In, Out), bias: (E, Out) | None -> (E, B, Out)."""
    E, B, In = x.shape
    assert weight.shape[0] == E and weight.shape[1] == In
    Out = weight.shape[2]
    has_bias = bias is not None
    if has_bias:
        assert bias.shape == (E, Out)

    itemsize = jnp.dtype(x.dtype).itemsize
    sub = max(8, 32 // itemsize)            # dtype-aware sublane unit (8/16/32)

    # ---- Tile / padding selection (minimize padding, divisor search) ----
    if tile_n is not None:
        tn = _round_up(tile_n, 128)
        Outp = _round_up(_round_up(Out, 128), tn)
    else:
        tn, Outp = _pick_tile(Out, 128, 512)

    if tile_m is not None:
        tm = _round_up(tile_m, sub)
        Bp = _round_up(_round_up(B, sub), tm)
    else:
        tm, Bp = _pick_tile(B, sub, 512)

    In_a = _round_up(In, 128)
    if tile_k is not None:
        tk = _round_up(tile_k, 128)
        Inp = _round_up(In_a, tk)
    else:
        # Prefer a single K tile: weight block stays resident across batch
        # tiles (the binding resource at modest batch sizes).
        denom = 2 * itemsize                               # double buffering
        tk_cap = (vmem_block_budget // denom - tm * tn) // (tm + tn)
        tk_cap = max(128, (tk_cap // 128) * 128)
        if In_a <= tk_cap:
            tk, Inp = In_a, In_a
        else:
            acc_bytes = tm * tn * 4                        # f32 scratch
            tk_cap = ((vmem_block_budget - acc_bytes) // denom - tm * tn) // (tm + tn)
            tk_cap = max(128, (tk_cap // 128) * 128)
            tk, Inp = _pick_tile(In, 128, min(tk_cap, 1024))
    multi_k = (Inp // tk) > 1

    # ---- Zero padding (exact for matmul; sliced off at the end) ----
    # NOTE: weight/bias are static parameters -- in a real model pad them once
    # at init; here we only pad when the shapes genuinely need it.
    xp = x if (Bp, Inp) == (B, In) else jnp.pad(
        x, ((0, 0), (0, Bp - B), (0, Inp - In)))
    wp = weight if (Inp, Outp) == (In, Out) else jnp.pad(
        weight, ((0, 0), (0, Inp - In), (0, Outp - Out)))
    if has_bias:
        bp = bias if Outp == Out else jnp.pad(bias, ((0, 0), (0, Outp - Out)))
        bp = bp.reshape(E, 1, Outp)     # lane-dense bias block, unit sublane

    nt, mt, kt = Outp // tn, Bp // tm, Inp // tk
    kernel = _make_kernel(has_bias, multi_k, compute_dtype)

    if multi_k:
        grid = (E, nt, mt, kt)
        x_spec = pl.BlockSpec((1, tm, tk), lambda e, n, m, k: (e, m, k))
        w_spec = pl.BlockSpec((1, tk, tn), lambda e, n, m, k: (e, k, n))
        b_spec = pl.BlockSpec((1, 1, tn), lambda e, n, m, k: (e, 0, n))
        o_spec = pl.BlockSpec((1, tm, tn), lambda e, n, m, k: (e, m, n))
        scratch = [pltpu.VMEM((tm, tn), jnp.float32)]
        sem = ("parallel", "parallel", "parallel", "arbitrary")
    else:
        grid = (E, nt, mt)
        # Weight index_map ignores m -> weight block reused across batch tiles.
        x_spec = pl.BlockSpec((1, tm, tk), lambda e, n, m: (e, m, 0))
        w_spec = pl.BlockSpec((1, tk, tn), lambda e, n, m: (e, 0, n))
        b_spec = pl.BlockSpec((1, 1, tn), lambda e, n, m: (e, 0, n))
        o_spec = pl.BlockSpec((1, tm, tn), lambda e, n, m: (e, m, n))
        scratch = []
        sem = ("parallel", "parallel", "parallel")

    in_specs = [x_spec, w_spec] + ([b_spec] if has_bias else [])
    operands = [xp, wp] + ([bp] if has_bias else [])

    out_bytes = E * Bp * Outp * itemsize
    bytes_accessed = int(xp.nbytes) + int(wp.nbytes) + \
        (int(bp.nbytes) if has_bias else 0) + out_bytes
    cost = pl.CostEstimate(flops=2 * E * Bp * Inp * Outp,
                           transcendentals=0,
                           bytes_accessed=bytes_accessed)

    out = pl.pallas_call(
        kernel,
        out_shape=jax.ShapeDtypeStruct((E, Bp, Outp), x.dtype),
        grid_spec=pltpu.PrefetchScalarGridSpec(
            num_scalar_prefetch=0,
            grid=grid,
            in_specs=in_specs,
            out_specs=o_spec,
            scratch_shapes=scratch),
        compiler_params=pltpu.CompilerParams(
            dimension_semantics=sem,
            vmem_limit_bytes=vmem_limit_bytes),
        cost_estimate=cost,
    )(*operands)

    if (Bp, Outp) != (B, Out):
        out = out[:, :B, :Out]
    return out


def init_ensemble_fc_params(key, in_features, out_features, ensemble_size,
                            bias=True, dtype=jnp.float32):
    """Mirror PyTorch __init__: xavier_uniform_ on (E, In, Out), zero bias."""
    fan_in = in_features * out_features
    fan_out = ensemble_size * out_features
    bound = math.sqrt(6.0 / (fan_in + fan_out))
    w = jax.random.uniform(
        key, (ensemble_size, in_features, out_features),
        minval=-bound, maxval=bound, dtype=dtype)
    b = jnp.zeros((ensemble_size, out_features), dtype=dtype) if bias else None
    return w, b


if __name__ == "__main__":
    key = jax.random.PRNGKey(0)
    k_w, k_x, k_w2, k_x2, k_b2, k_w3, k_x3, k_b3, k_w4, k_x4 = \
        jax.random.split(key, 10)

    # --- Test 1: small, module-consistent shapes (single tile, single-K) ---
    ensemble_size, batch, in_features, out_features = 4, 8, 32, 32
    weight, bias = init_ensemble_fc_params(
        k_w, in_features, out_features, ensemble_size, bias=True)
    x = jax.random.normal(
        k_x, (ensemble_size, batch, in_features), dtype=jnp.float32)
    out = jax.block_until_ready(ensemble_fc(x, weight, bias))
    ref = jnp.einsum("ebi,eio->ebo", x, weight) + bias[:, None, :]
    assert out.shape == (ensemble_size, batch, out_features)
    assert jnp.allclose(out, ref, atol=1e-5, rtol=1e-5)

    # --- Test 2: non-aligned B/In/Out -> padding path, single-K ---
    E2, B2, In2, Out2 = 2, 24, 200, 160
    w2 = jax.random.normal(k_w2, (E2, In2, Out2), dtype=jnp.float32) * 0.05
    b2 = jax.random.normal(k_b2, (E2, Out2), dtype=jnp.float32) * 0.05
    x2 = jax.random.normal(k_x2, (E2, B2, In2), dtype=jnp.float32)
    out2 = jax.block_until_ready(ensemble_fc(x2, w2, b2))
    ref2 = jnp.einsum("ebi,eio->ebo", x2, w2) + b2[:, None, :]
    assert out2.shape == (E2, B2, Out2)
    assert jnp.allclose(out2, ref2, atol=1e-4, rtol=1e-4)

    # --- Test 3: force the multi-K accumulator path (tile_k override) ---
    E3, B3, In3, Out3 = 2, 16, 300, 96
    w3 = jax.random.normal(k_w3, (E3, In3, Out3), dtype=jnp.float32) * 0.05
    b3 = jax.random.normal(k_b3, (E3, Out3), dtype=jnp.float32) * 0.05
    x3 = jax.random.normal(k_x3, (E3, B3, In3), dtype=jnp.float32)
    out3 = jax.block_until_ready(ensemble_fc(x3, w3, b3, tile_k=128))
    ref3 = jnp.einsum("ebi,eio->ebo", x3, w3) + b3[:, None, :]
    assert out3.shape == (E3, B3, Out3)
    assert jnp.allclose(out3, ref3, atol=1e-4, rtol=1e-4)

    # --- Test 4: bias=False variant (no zeros array materialized) ---
    E4, B4, In4, Out4 = 2, 8, 64, 48
    w4 = jax.random.normal(k_w4, (E4, In4, Out4), dtype=jnp.float32) * 0.05
    x4 = jax.random.normal(k_x4, (E4, B4, In4), dtype=jnp.float32)
    out4 = jax.block_until_ready(ensemble_fc(x4, w4, None))
    ref4 = jnp.einsum("ebi,eio->ebo", x4, w4)
    assert out4.shape == (E4, B4, Out4)
    assert jnp.allclose(out4, ref4, atol=1e-5, rtol=1e-5)

    print("KERNEL_OK")
</pallas_src>

<mosaic_0001>
module attributes {stable_mosaic.version = 11 : i64} {
  func.func @kernel(%arg0: i32, %arg1: i32, %arg2: i32, %arg3: memref<1x8x128xf32, #tpu.memory_space<vmem>>, %arg4: memref<1x128x128xf32, #tpu.memory_space<vmem>>, %arg5: memref<1x1x128xf32, #tpu.memory_space<vmem>>, %arg6: memref<1x8x128xf32, #tpu.memory_space<vmem>>) attributes {dimension_semantics = [#tpu.dimension_semantics<parallel>, #tpu.dimension_semantics<parallel>, #tpu.dimension_semantics<parallel>], iteration_bounds = array<i64: 4, 1, 1>, scalar_prefetch = 0 : i64, scratch_operands = 0 : i64, tpu.core_type = #tpu.core_type<tc>, window_params = [{transform_indices = @transform_0, window_bounds = array<i64: 1, 8, 128>}, {transform_indices = @transform_1, window_bounds = array<i64: 1, 128, 128>}, {transform_indices = @transform_2, window_bounds = array<i64: 1, 1, 128>}, {transform_indices = @transform_3, window_bounds = array<i64: 1, 8, 128>}]} {
    %c0 = arith.constant 0 : index
    %c0_0 = arith.constant 0 : index
    %c0_1 = arith.constant 0 : index
    %0 = vector.load %arg3[%c0, %c0_0, %c0_1] : memref<1x8x128xf32, #tpu.memory_space<vmem>>, vector<1x8x128xf32>
    %1 = vector.shape_cast %0 : vector<1x8x128xf32> to vector<8x128xf32>
    %c0_2 = arith.constant 0 : index
    %c0_3 = arith.constant 0 : index
    %c0_4 = arith.constant 0 : index
    %2 = vector.load %arg4[%c0_2, %c0_3, %c0_4] : memref<1x128x128xf32, #tpu.memory_space<vmem>>, vector<1x128x128xf32>
    %3 = vector.shape_cast %2 : vector<1x128x128xf32> to vector<128x128xf32>
    %cst = arith.constant dense<0.000000e+00> : vector<8x128xf32>
    %4 = tpu.matmul %1, %3, %cst {dimension_numbers = #tpu.dot_dimension_numbers<[1], [0], [0], [1], [0, 0, 1, 1], [], []>} : vector<8x128xf32>, vector<128x128xf32>, vector<8x128xf32> -> vector<8x128xf32>
    %c0_5 = arith.constant 0 : index
    %c0_6 = arith.constant 0 : index
    %c0_7 = arith.constant 0 : index
    %5 = vector.load %arg5[%c0_5, %c0_6, %c0_7] : memref<1x1x128xf32, #tpu.memory_space<vmem>>, vector<1x1x128xf32>
    %6 = vector.shape_cast %5 : vector<1x1x128xf32> to vector<1x128xf32>
    %7 = vector.broadcast %6 : vector<1x128xf32> to vector<8x128xf32>
    %8 = arith.addf %4, %7 : vector<8x128xf32>
    %c0_8 = arith.constant 0 : index
    %c0_9 = arith.constant 0 : index
    %c0_10 = arith.constant 0 : index
    %9 = vector.load %arg6[%c0_8, %c0_9, %c0_10] : memref<1x8x128xf32, #tpu.memory_space<vmem>>, vector<1x8x128xf32>
    %10 = vector.shape_cast %9 : vector<1x8x128xf32> to vector<8x128xf32>
    %11 = vector.shape_cast %8 : vector<8x128xf32> to vector<1x8x128xf32>
    tpu.vector_store %arg6[%c0_8, %c0_9, %c0_10], %11 {strides = array<i32>} : memref<1x8x128xf32, #tpu.memory_space<vmem>>, vector<1x8x128xf32>,
    return
  }
  func.func @transform_0(%arg0: i32, %arg1: i32, %arg2: i32) -> (i32, i32, i32) {
    %c0_i32 = arith.constant 0 : i32
    %c0_i32_0 = arith.constant 0 : i32
    return %arg0, %arg2, %c0_i32 : i32, i32, i32
  }
  func.func @transform_1(%arg0: i32, %arg1: i32, %arg2: i32) -> (i32, i32, i32) {
    %c0_i32 = arith.constant 0 : i32
    %c0_i32_0 = arith.constant 0 : i32
    return %arg0, %c0_i32, %arg1 : i32, i32, i32
  }
  func.func @transform_2(%arg0: i32, %arg1: i32, %arg2: i32) -> (i32, i32, i32) {
    %c0_i32 = arith.constant 0 : i32
    %c0_i32_0 = arith.constant 0 : i32
    return %arg0, %c0_i32, %arg1 : i32, i32, i32
  }
  func.func @transform_3(%arg0: i32, %arg1: i32, %arg2: i32) -> (i32, i32, i32) {
    %c0_i32 = arith.constant 0 : i32
    return %arg0, %arg2, %arg1 : i32, i32, i32
  }
}

</mosaic_0001>

<llo_original>
// kernel: tpu_custom_call.1
$region0: #{tpu_custom_call.1}
  #allocation0 [shape = 'u32[]', space=smem, size = 0x4, offset = 0x4, fixed_abs, tag = 'smem constant byte address 0x4 - core index']
  #allocation1 [shape = 'u32[144,128]{1,0:T(1,128)}', space=vmem, size = 0x12000, scoped, tag = 'internal scratch']
  %s0 = inlined_call_operand.hbm [shape: f32[4,8,128], index: 0, kind: input, shape index: {}]
  %s1 = inlined_call_operand.hbm [shape: f32[4,128,128], index: 1, kind: input, shape index: {}]
  %s2 = inlined_call_operand.hbm [shape: f32[4,1,128], index: 2, kind: input, shape index: {}]
  %s3 = inlined_call_operand.hbm [shape: f32[4,8,128], index: 3, kind: output, shape index: {}]
  %s4 = sld [smem:[#allocation0]]
  $region57: #{tpu_custom_call.1} parent=0
    _
  %s6 = ssub.s32 1, %s4
  %s7 = scalar_select 0, %s6, %s4
  $region1: #{tpu_custom_call.1} parent=0
    #allocation2 [shape = 'u8[8192]{0}', space=vmem, size = 0x2000, scoped, tag = 'input window, operand 0']
    #allocation3 [shape = 's32[2]{0}', space=sflag, size = 0x8, scoped, tag = 'scoped memory for tpu_custom_call.1']
    #allocation4 [shape = 's32[2]{0}', space=sflag, size = 0x8, scoped, tag = 'scoped memory for tpu_custom_call.1']
    #allocation5 [shape = 'u8[131072]{0}', space=vmem, size = 0x20000, scoped, tag = 'input window, operand 1']
    #allocation6 [shape = 's32[2]{0}', space=sflag, size = 0x8, scoped, tag = 'scoped memory for tpu_custom_call.1']
    #allocation7 [shape = 'u8[1024]{0}', space=vmem, size = 0x400, scoped, tag = 'input window, operand 2']
    #allocation8 [shape = 'u8[8192]{0}', space=vmem, size = 0x2000, scoped, tag = 'output window, operand 0']
    %8 = vsyncpa [#allocation3], 0
    %s9 = scalar_lea.sflag [#allocation3], 1
    %10 = vsyncpa %s9, 0
    %11 = vsyncpa [#allocation6], 0
    %s12 = scalar_lea.sflag [#allocation6], 1
    %13 = vsyncpa %s12, 0
    %14 = vsyncpa [#allocation4], 0
    %s15 = scalar_lea.sflag [#allocation4], 1
    %16 = vsyncpa %s15, 0
    loop: start=0, step=1, limit=6
    $region2: #{tpu_custom_call.1} parent=1 // loop_pre_header
      _
    $region3: #{tpu_custom_call.1} parent=1 // loop_header
      %s18 = sphi 0, %s22
      %p19 = scmp.ge.s32.totalorder %s18, 6
      %s25 = sphi 0, %s44
      %s26 = sphi 0, %s40
      %s27 = sphi 0, %s36
      %s28 = sphi 0, %s25
      %s29 = sphi 0, %s26
      %s30 = sphi 0, %s27
      %s31 = sphi 0, %s28
      %s32 = sphi 0, %s29
      %s33 = sphi 0, %s30
      %s49 = sphi 0, %s51
      %s52 = sphi 0, %s49
      %s53 = sphi 0, %s52
      %s69 = sphi 0, %s53
      %s77 = sphi 0, %s79
      %s80 = sphi 0, %s77
      %s81 = sphi 0, %s80
      %s97 = sphi 0, %s81
      %s105 = sphi 0, %s107
      %s108 = sphi 0, %s105
      %s109 = sphi 0, %s108
      %s125 = sphi 0, %s109
      %s135 = sphi 0, %s137
      %s138 = sphi 0, %s135
      %s139 = sphi 0, %s138
      %s155 = sphi 0, %s139
    $region4: #{tpu_custom_call.1} parent=1 // loop_header_branch
      %21 = sbr.rel (%p19) target = $region8
    $region5: #{tpu_custom_call.1} parent=1 // loop_body
      %s23 = ssub.s32 %s18, 1
      %s24 = ssub.s32 %s18, 2
      %s34 = sadd.s32 1, %s27
      %p35 = scmp.ge.s32.totalorder %s34, 1
      %s36 = scalar_select %p35, 0, %s34
      %s37 = sadd.s32 1, %s26
      %s38 = scalar_select %p35, %s37, %s26
      %p39 = scmp.ge.s32.totalorder %s38, 1
      %s40 = scalar_select %p39, 0, %s38
      %s41 = sadd.s32 1, %s25
      %s42 = scalar_select %p39, %s41, %s25
      %p43 = scmp.ge.s32.totalorder %s42, 4
      %s44 = scalar_select %p43, 0, %s42
      %s45 = ssub.s32 %s25, %s44
      %s46 = ssub.s32 %s27, %s36
      %s47 = sor.u32 %s45, %s46
      %p48 = scmp.eq.s32.totalorder %s47, 0
      %s50 = sadd.s32 %s49, 1
      %s51 = scalar_select %p48, %s49, %s50
      %p54 = pneg %p48
      %p55 = scmp.eq.s32.totalorder %s18, 3
      %p56 = por %p54, %p55
      %p57 = scmp.ne.s32.totalorder %s49, %s52
      %p58 = scmp.eq.s32.totalorder %s18, 0
      %p59 = por %p57, %p58
      %p60 = scmp.ne.s32.totalorder %s49, %s52
      %p61 = scmp.eq.s32.totalorder %s23, 3
      %p62 = por %p60, %p61
      %p63 = scmp.ne.s32.totalorder %s52, %s53
      %p64 = scmp.eq.s32.totalorder %s23, 0
      %p65 = por %p63, %p64
      %p66 = scmp.ne.s32.totalorder %s52, %s53
      %p67 = scmp.eq.s32.totalorder %s24, 3
      %p68 = por %p66, %p67
      %p70 = scmp.ne.s32.totalorder %s53, %s69
      %p71 = scmp.eq.s32.totalorder %s24, 0
      %p72 = por %p70, %p71
      %s73 = ssub.s32 %s25, %s44
      %s74 = ssub.s32 %s26, %s40
      %s75 = sor.u32 %s73, %s74
      %p76 = scmp.eq.s32.totalorder %s75, 0
      %s78 = sadd.s32 %s77, 1
      %s79 = scalar_select %p76, %s77, %s78
      %p82 = pneg %p76
      %p83 = scmp.eq.s32.totalorder %s18, 3
      %p84 = por %p82, %p83
      %p85 = scmp.ne.s32.totalorder %s77, %s80
      %p86 = scmp.eq.s32.totalorder %s18, 0
      %p87 = por %p85, %p86
      %p88 = scmp.ne.s32.totalorder %s77, %s80
      %p89 = scmp.eq.s32.totalorder %s23, 3
      %p90 = por %p88, %p89
      %p91 = scmp.ne.s32.totalorder %s80, %s81
      %p92 = scmp.eq.s32.totalorder %s23, 0
      %p93 = por %p91, %p92
      %p94 = scmp.ne.s32.totalorder %s80, %s81
      %p95 = scmp.eq.s32.totalorder %s24, 3
      %p96 = por %p94, %p95
      %p98 = scmp.ne.s32.totalorder %s81, %s97
      %p99 = scmp.eq.s32.totalorder %s24, 0
      %p100 = por %p98, %p99
      %s101 = ssub.s32 %s25, %s44
      %s102 = ssub.s32 %s26, %s40
      %s103 = sor.u32 %s101, %s102
      %p104 = scmp.eq.s32.totalorder %s103, 0
      %s106 = sadd.s32 %s105, 1
      %s107 = scalar_select %p104, %s105, %s106
      %p110 = pneg %p104
      %p111 = scmp.eq.s32.totalorder %s18, 3
      %p112 = por %p110, %p111
      %p113 = scmp.ne.s32.totalorder %s105, %s108
      %p114 = scmp.eq.s32.totalorder %s18, 0
      %p115 = por %p113, %p114
      %p116 = scmp.ne.s32.totalorder %s105, %s108
      %p117 = scmp.eq.s32.totalorder %s23, 3
      %p118 = por %p116, %p117
      %p119 = scmp.ne.s32.totalorder %s108, %s109
      %p120 = scmp.eq.s32.totalorder %s23, 0
      %p121 = por %p119, %p120
      %p122 = scmp.ne.s32.totalorder %s108, %s109
      %p123 = scmp.eq.s32.totalorder %s24, 3
      %p124 = por %p122, %p123
      %p126 = scmp.ne.s32.totalorder %s109, %s125
      %p127 = scmp.eq.s32.totalorder %s24, 0
      %p128 = por %p126, %p127
      %s129 = ssub.s32 %s25, %s44
      %s130 = ssub.s32 %s27, %s36
      %s131 = sor.u32 %s129, %s130
      %s132 = ssub.s32 %s26, %s40
      %s133 = sor.u32 %s131, %s132
      %p134 = scmp.eq.s32.totalorder %s133, 0
      %s136 = sadd.s32 %s135, 1
      %s137 = scalar_select %p134, %s135, %s136
      %p140 = pneg %p134
      %p141 = scmp.eq.s32.totalorder %s18, 3
      %p142 = por %p140, %p141
      %p143 = scmp.ne.s32.totalorder %s135, %s138
      %p144 = scmp.eq.s32.totalorder %s18, 0
      %p145 = por %p143, %p144
      %p146 = scmp.ne.s32.totalorder %s135, %s138
      %p147 = scmp.eq.s32.totalorder %s23, 3
      %p148 = por %p146, %p147
      %p149 = scmp.ne.s32.totalorder %s138, %s139
      %p150 = scmp.eq.s32.totalorder %s23, 0
      %p151 = por %p149, %p150
      %p152 = scmp.ne.s32.totalorder %s138, %s139
      %p153 = scmp.eq.s32.totalorder %s24, 3
      %p154 = por %p152, %p153
      %p156 = scmp.ne.s32.totalorder %s139, %s155
      %p157 = scmp.eq.s32.totalorder %s24, 0
      %p158 = por %p156, %p157
      %p159 = scmp.le.s32.totalorder 1, %s18
      %p160 = scmp.lt.s32.totalorder %s18, 5
      %p161 = pnand %p159, %p160
      %p162 = pneg %p161
      // Predicated region
      $region9: #{tpu_custom_call.1} parent=5 // pred_check
        _
      $region10: #{tpu_custom_call.1} parent=5 // pred_check_branch
        %164 = sbr.rel (%p161) target = $region12
      $region11: #{tpu_custom_call.1} parent=5 // pred_region
        %s165 = ssub.s32 %s18, 1
      $region12: #{tpu_custom_call.1} parent=5 // pred_fallthru
        _
      %p166 = scmp.lt.s32.totalorder %s18, 4
      // Predicated region
      $region13: #{tpu_custom_call.1} parent=5 // pred_check
        %p167 = pneg %p166
      $region14: #{tpu_custom_call.1} parent=5 // pred_check_branch
        %169 = sbr.rel (%p167) target = $region16
      $region15: #{tpu_custom_call.1} parent=5 // pred_region
        // Predicated region
        $region17: #{tpu_custom_call.1} parent=15 // pred_check
          %p170 = pneg %p59
        $region18: #{tpu_custom_call.1} parent=15 // pred_check_branch
          %172 = sbr.rel (%p170) target = $region20
        $region19: #{tpu_custom_call.1} parent=15 // pred_region
          %s173 = sand.u32 %s49, 1
          %s174 = scalar_lea.sflag [#allocation3], %s173
          %s175 = sand.u32 %s49, 1
          %s176 = smul.addr %s175, 8
          %s177 = scalar_lea.vmem [#allocation2], %s176
          %s179 = ssub.s32 128, 128
          %180 = vsyncadd %s174, %s179
          %s181 = sadd.s32 %s27, %s25
          %s182 = smul.addr %s181, 128
          %s183 = scalar_lea.hbm %s0, %s182
          %s185 = sshll.u32 %s177, 4
          %s186 = int_to_ptr.vmem [resolvable:$true] %s185
          %188 = dma.hbm_to_vmem [thread:$0]  %s183, 128, %s186, %s174
        $region20: #{tpu_custom_call.1} parent=15 // pred_fallthru
          _
        // Predicated region
        $region21: #{tpu_custom_call.1} parent=15 // pred_check
          %p189 = pneg %p87
        $region22: #{tpu_custom_call.1} parent=15 // pred_check_branch
          %191 = sbr.rel (%p189) target = $region24
        $region23: #{tpu_custom_call.1} parent=15 // pred_region
          %s192 = sand.u32 %s18, 1
          %s193 = scalar_lea.sflag [#allocation6], %s192
          %s194 = sand.u32 %s77, 1
          %s195 = smul.addr %s194, 128
          %s196 = scalar_lea.vmem [#allocation5], %s195
          %s198 = ssub.s32 2048, 2048
          %199 = vsyncadd %s193, %s198
          %s200 = smul.addr %s25, 16
          %s201 = sadd.s32 %s26, %s200
          %s202 = smul.addr %s201, 128
          %s203 = scalar_lea.hbm %s1, %s202
          %s204 = sshll.u32 %s196, 4
          %s205 = int_to_ptr.vmem [resolvable:$true] %s204
          %210 = dma.hbm_to_vmem [thread:$0]  %s203, 2048, %s205, %s193, 128, 128, 8
        $region24: #{tpu_custom_call.1} parent=15 // pred_fallthru
          _
        // Predicated region
        $region25: #{tpu_custom_call.1} parent=15 // pred_check
          %p211 = pneg %p115
        $region26: #{tpu_custom_call.1} parent=15 // pred_check_branch
          %213 = sbr.rel (%p211) target = $region28
        $region27: #{tpu_custom_call.1} parent=15 // pred_region
          %s214 = sand.u32 %s18, 1
          %s215 = scalar_lea.sflag [#allocation6], %s214
          %s216 = sand.u32 %s105, 1
          %s217 = scalar_lea.vmem [#allocation7], %s216
          %s219 = ssub.s32 16, 16
          %220 = vsyncadd %s215, %s219
          %s221 = sadd.s32 %s26, %s25
          %s222 = smul.addr %s221, 16
          %s223 = scalar_lea.hbm %s2, %s222
          %s225 = sshll.u32 %s217, 4
          %s226 = int_to_ptr.vmem [resolvable:$true] %s225
          %228 = dma.hbm_to_vmem [thread:$0]  %s223, 16, %s226, %s215
        $region28: #{tpu_custom_call.1} parent=15 // pred_fallthru
          _
      $region16: #{tpu_custom_call.1} parent=5 // pred_fallthru
        _
      %p229 = scmp.le.s32.totalorder 1, %s18
      %p230 = scmp.lt.s32.totalorder %s18, 5
      %p231 = pnand %p229, %p230
      %p232 = pneg %p231
      // Predicated region
      $region29: #{tpu_custom_call.1} parent=5 // pred_check
        _
      $region30: #{tpu_custom_call.1} parent=5 // pred_check_branch
        %234 = sbr.rel (%p231) target = $region32
      $region31: #{tpu_custom_call.1} parent=5 // pred_region
        %s235 = ssub.s32 %s18, 1
        %s236 = sand.u32 %s52, 1
        %s237 = scalar_lea.sflag [#allocation3], %s236
        %s238 = sand.u32 %s52, 1
        %s239 = smul.addr %s238, 8
        %s240 = scalar_lea.vmem [#allocation2], %s239
        // Predicated region
        $region33: #{tpu_custom_call.1} parent=31 // pred_check
          %p241 = pneg %p65
        $region34: #{tpu_custom_call.1} parent=31 // pred_check_branch
          %243 = sbr.rel (%p241) target = $region36
        $region35: #{tpu_custom_call.1} parent=31 // pred_region
          %244 = dma.done %s237, 128
        $region36: #{tpu_custom_call.1} parent=31 // pred_fallthru
          _
        %s245 = sand.u32 %s23, 1
        %s246 = scalar_lea.sflag [#allocation6], %s245
        %s247 = sand.u32 %s80, 1
        %s248 = smul.addr %s247, 128
        %s249 = scalar_lea.vmem [#allocation5], %s248
        // Predicated region
        $region37: #{tpu_custom_call.1} parent=31 // pred_check
          %p250 = pneg %p93
        $region38: #{tpu_custom_call.1} parent=31 // pred_check_branch
          %252 = sbr.rel (%p250) target = $region40
        $region39: #{tpu_custom_call.1} parent=31 // pred_region
          %253 = dma.done %s246, 2048
        $region40: #{tpu_custom_call.1} parent=31 // pred_fallthru
          _
        %s254 = sand.u32 %s23, 1
        %s255 = scalar_lea.sflag [#allocation6], %s254
        %s256 = sand.u32 %s108, 1
        %s257 = scalar_lea.vmem [#allocation7], %s256
        // Predicated region
        $region41: #{tpu_custom_call.1} parent=31 // pred_check
          %p258 = pneg %p121
        $region42: #{tpu_custom_call.1} parent=31 // pred_check_branch
          %260 = sbr.rel (%p258) target = $region44
        $region43: #{tpu_custom_call.1} parent=31 // pred_region
          %261 = dma.done %s255, 16
        $region44: #{tpu_custom_call.1} parent=31 // pred_fallthru
          _
        %s262 = sand.u32 %s52, 1
        %s263 = scalar_lea.sflag [#allocation3], %s262
        %s264 = sand.u32 %s52, 1
        %s265 = smul.addr %s264, 8
        %s266 = scalar_lea.vmem [#allocation2], %s265
        %p267 = pneg %p65
        %p268 = pneg %p62
        %s269 = sand.u32 %s23, 1
        %s270 = scalar_lea.sflag [#allocation6], %s269
        %s271 = sand.u32 %s80, 1
        %s272 = smul.addr %s271, 128
        %s273 = scalar_lea.vmem [#allocation5], %s272
        %p274 = pneg %p93
        %p275 = pneg %p90
        %s276 = sand.u32 %s23, 1
        %s277 = scalar_lea.sflag [#allocation6], %s276
        %s278 = sand.u32 %s108, 1
        %s279 = scalar_lea.vmem [#allocation7], %s278
        %p280 = pneg %p121
        %p281 = pneg %p118
        %p282 = pneg %p151
        %p283 = pneg %p148
        %s284 = sand.u32 %s138, 1
        %s285 = scalar_lea.sflag [#allocation4], %s284
        %s286 = sand.u32 %s138, 1
        %s287 = smul.addr %s286, 8
        %s288 = scalar_lea.vmem [#allocation8], %s287
        %v289 = vld [vmem:[%s240] sm:$0xff]
        %v290 = vld [vmem:[%s249] sm:$0xff]
        %v291 = vld [vmem:[%s249 + $0x8] sm:$0xff]
        %v292 = vld [vmem:[%s249 + $0x10] sm:$0xff]
        %v293 = vld [vmem:[%s249 + $0x18] sm:$0xff]
        %v294 = vld [vmem:[%s249 + $0x20] sm:$0xff]
        %v295 = vld [vmem:[%s249 + $0x28] sm:$0xff]
        %v296 = vld [vmem:[%s249 + $0x30] sm:$0xff]
        %v297 = vld [vmem:[%s249 + $0x38] sm:$0xff]
        %v298 = vld [vmem:[%s249 + $0x40] sm:$0xff]
        %v299 = vld [vmem:[%s249 + $0x48] sm:$0xff]
        %v300 = vld [vmem:[%s249 + $0x50] sm:$0xff]
        %v301 = vld [vmem:[%s249 + $0x58] sm:$0xff]
        %v302 = vld [vmem:[%s249 + $0x60] sm:$0xff]
        %v303 = vld [vmem:[%s249 + $0x68] sm:$0xff]
        %v304 = vld [vmem:[%s249 + $0x70] sm:$0xff]
        %v305 = vld [vmem:[%s249 + $0x78] sm:$0xff]
        %v306 = vld [vmem:[%s257] sm:$0x1]
        %v308 = vlaneseq
        %v309 = vshrl.u32 %v308, 7
        %v310 = vsub.s32 0, %v309
        %v311 = vrot.slane %v306, %v310
        %313 = vmatprep.subr.mxu0 0.0
        %314 = vmatpush1.msra.mxu0 %v305
        %315 = vmatprep.subr.mxu0 0.0
        %316 = vmatpush1.msra.mxu0 %v304
        %317 = vmatprep.subr.mxu0 0.0
        %318 = vmatpush1.msra.mxu0 %v303
        %319 = vmatprep.subr.mxu0 0.0
        %320 = vmatpush1.msra.mxu0 %v302
        %321 = vmatprep.subr.mxu0 0.0
        %322 = vmatpush1.msra.mxu0 %v301
        %323 = vmatprep.subr.mxu0 0.0
        %324 = vmatpush1.msra.mxu0 %v300
        %325 = vmatprep.subr.mxu0 0.0
        %326 = vmatpush1.msra.mxu0 %v299
        %327 = vmatprep.subr.mxu0 0.0
        %328 = vmatpush1.msra.mxu0 %v298
        %329 = vmatprep.subr.mxu0 0.0
        %330 = vmatpush1.msra.mxu0 %v297
        %331 = vmatprep.subr.mxu0 0.0
        %332 = vmatpush1.msra.mxu0 %v296
        %333 = vmatprep.subr.mxu0 0.0
        %334 = vmatpush1.msra.mxu0 %v295
        %335 = vmatprep.subr.mxu0 0.0
        %336 = vmatpush1.msra.mxu0 %v294
        %337 = vmatprep.subr.mxu0 0.0
        %338 = vmatpush1.msra.mxu0 %v293
        %339 = vmatprep.subr.mxu0 0.0
        %340 = vmatpush1.msra.mxu0 %v292
        %341 = vmatprep.subr.mxu0 0.0
        %342 = vmatpush1.msra.mxu0 %v291
        %343 = vmatprep.subr.mxu0 0.0
        %344 = vmatpush1.msra.mxu0 %v290
        %345 = vmatprep.subr.mxu0 0.0
        %346 = vmatpush2.msra.mxu0 0.0
        %347 = vmatprep.subr.mxu0 0.0
        %348 = vmatpush2.msra.mxu0 0.0
        %349 = vmatprep.subr.mxu0 0.0
        %350 = vmatpush2.msra.mxu0 0.0
        %351 = vmatprep.subr.mxu0 0.0
        %352 = vmatpush2.msra.mxu0 0.0
        %353 = vmatprep.subr.mxu0 0.0
        %354 = vmatpush2.msra.mxu0 0.0
        %355 = vmatprep.subr.mxu0 0.0
        %356 = vmatpush2.msra.mxu0 0.0
        %357 = vmatprep.subr.mxu0 0.0
        %358 = vmatpush2.msra.mxu0 0.0
        %359 = vmatprep.subr.mxu0 0.0
        %360 = vmatpush2.msra.mxu0 0.0
        %361 = vmatprep.subr.mxu0 0.0
        %362 = vmatpush2.msra.mxu0 0.0
        %363 = vmatprep.subr.mxu0 0.0
        %364 = vmatpush2.msra.mxu0 0.0
        %365 = vmatprep.subr.mxu0 0.0
        %366 = vmatpush2.msra.mxu0 0.0
        %367 = vmatprep.subr.mxu0 0.0
        %368 = vmatpush2.msra.mxu0 0.0
        %369 = vmatprep.subr.mxu0 0.0
        %370 = vmatpush2.msra.mxu0 0.0
        %371 = vmatprep.subr.mxu0 0.0
        %372 = vmatpush2.msra.mxu0 0.0
        %373 = vmatprep.subr.mxu0 0.0
        %374 = vmatpush2.msra.mxu0 0.0
        %375 = vmatprep.subr.mxu0 0.0
        %376 = vmatpush2.msra.mxu0 0.0
        %377 = vmatprep.mubr.f32.mxu0 0.0
        %378 = vmatmul.mubr.f32.gmra.mxu0 %v289
        %v379 = vpop.f32.mrf.mxu0
        %v380 = vadd.f32 %v311, %v379
        %v381 = vpop.f32.mrf.mxu0
        %382 = vdwg.mxu0
        %383 = vst [vmem:[%s288] sm:$0xff] %v380
        %s384 = sand.u32 %s138, 1
        %s385 = scalar_lea.sflag [#allocation4], %s384
        %s386 = sand.u32 %s138, 1
        %s387 = smul.addr %s386, 8
        %s388 = scalar_lea.vmem [#allocation8], %s387
        // Predicated region
        $region45: #{tpu_custom_call.1} parent=31 // pred_check
          %p389 = pneg %p148
        $region46: #{tpu_custom_call.1} parent=31 // pred_check_branch
          %391 = sbr.rel (%p389) target = $region48
        $region47: #{tpu_custom_call.1} parent=31 // pred_region
          %s393 = ssub.s32 128, 128
          %394 = vsyncadd %s385, %s393
          %s395 = sadd.s32 %s29, %s30
          %s396 = sadd.s32 %s395, %s28
          %s397 = smul.addr %s396, 128
          %s398 = scalar_lea.hbm %s3, %s397
          %s400 = sshll.u32 %s388, 4
          %s401 = int_to_ptr.vmem [resolvable:$true] %s400
          %403 = dma.vmem_to_hbm [thread:$0]  %s401, 128, %s398, %s385
        $region48: #{tpu_custom_call.1} parent=31 // pred_fallthru
          _
      $region32: #{tpu_custom_call.1} parent=5 // pred_fallthru
        _
      %p404 = scmp.le.s32.totalorder 2, %s18
      // Predicated region
      $region49: #{tpu_custom_call.1} parent=5 // pred_check
        %p405 = pneg %p404
      $region50: #{tpu_custom_call.1} parent=5 // pred_check_branch
        %407 = sbr.rel (%p405) target = $region52
      $region51: #{tpu_custom_call.1} parent=5 // pred_region
        %s408 = ssub.s32 %s18, 2
        // Predicated region
        $region53: #{tpu_custom_call.1} parent=51 // pred_check
          %p409 = pneg %p154
        $region54: #{tpu_custom_call.1} parent=51 // pred_check_branch
          %411 = sbr.rel (%p409) target = $region56
        $region55: #{tpu_custom_call.1} parent=51 // pred_region
          %s412 = sand.u32 %s139, 1
          %s413 = scalar_lea.sflag [#allocation4], %s412
          %s414 = sand.u32 %s139, 1
          %s415 = smul.addr %s414, 8
          %s416 = scalar_lea.vmem [#allocation8], %s415
          %417 = dma.done %s413, 128
        $region56: #{tpu_custom_call.1} parent=51 // pred_fallthru
          _
      $region52: #{tpu_custom_call.1} parent=5 // pred_fallthru
        _
    $region6: #{tpu_custom_call.1} parent=1 // loop_footer
      %s22 = sadd.s32 1, %s18
    $region7: #{tpu_custom_call.1} parent=1 // loop_footer_branch
      %17 = sbr.rel target = $region3
    $region8: #{tpu_custom_call.1} parent=1 // loop_exit
      _
    %418 = vsyncpa [#allocation3], 1
    %s419 = scalar_lea.sflag [#allocation3], 1
    %420 = vsyncpa %s419, 1
    %421 = vsyncpa [#allocation6], 1
    %s422 = scalar_lea.sflag [#allocation6], 1
    %423 = vsyncpa %s422, 1
    %424 = vsyncpa [#allocation4], 1
    %s425 = scalar_lea.sflag [#allocation4], 1
    %426 = vsyncpa %s425, 1

</llo_original>
